<compile_context>
chip_gen: v6e
topology: v6e:2x2x1
jax: 0.10.0
libtpu: 0.0.40
codegen_flags: <defaults>
</compile_context>

<pallas_src>
import jax
import jax.numpy as jnp
from jax.experimental import pallas as pl
from jax.experimental.pallas import tpu as pltpu


def _conv3x3_mm_kernel(w_ref, b_ref, xcol_ref, o_ref):
    # w_ref:    (Cout, K)   flattened 3x3xCin filter, K = 9*Cin
    # b_ref:    (Cout, 1)   bias column (zeros when the conv has no bias)
    # xcol_ref: (K, TN)     im2col columns for TN output pixels
    # o_ref:    (Cout, TN)  output tile, lane axis = flattened spatial
    acc = jnp.dot(
        w_ref[...],
        xcol_ref[...],
        preferred_element_type=jnp.float32,
        precision=jax.lax.Precision.HIGHEST,
    )
    acc = acc + b_ref[...].astype(jnp.float32)
    o_ref[...] = acc.astype(o_ref.dtype)


def _conv3x3_pallas(x, weight, bias, *, tn_cap=8192):
    """3x3 / stride-1 / pad-1 conv in NCHW via im2col + fused Pallas matmul."""
    b, cin, h, w = x.shape
    cout = weight.shape[0]
    n = h * w
    k = 9 * cin

    # Semantically required halo pad (only touches the small cin-channel input).
    xp = jnp.pad(x, ((0, 0), (0, 0), (1, 1), (1, 1)))

    # im2col: channel index = (dy*3 + dx)*cin + ci (must match w_flat below).
    taps = [xp[:, :, dy:dy + h, dx:dx + w] for dy in range(3) for dx in range(3)]
    x_col = jnp.concatenate(taps, axis=1).reshape(b, k, n)

    # PyTorch layout (Cout, Cin, 3, 3) -> (Cout, dy, dx, Cin) -> (Cout, 9*Cin)
    w_flat = jnp.transpose(weight, (0, 2, 3, 1)).reshape(cout, k)
    if bias is None:
        b_col = jnp.zeros((cout, 1), dtype=jnp.float32)
    else:
        b_col = bias.reshape(cout, 1).astype(jnp.float32)

    # Spatial tile: full image if small, otherwise a large multiple of 128.
    tn = n if n <= tn_cap else tn_cap
    grid = (b, pl.cdiv(n, tn))

    out = pl.pallas_call(
        _conv3x3_mm_kernel,
        out_shape=jax.ShapeDtypeStruct((b, cout, n), x.dtype),
        grid=grid,
        in_specs=[
            pl.BlockSpec((cout, k), lambda bi, ni: (0, 0)),       # weight (resident)
            pl.BlockSpec((cout, 1), lambda bi, ni: (0, 0)),       # bias   (resident)
            pl.BlockSpec((None, k, tn), lambda bi, ni: (bi, 0, ni)),   # x_col tile
        ],
        out_specs=pl.BlockSpec((None, cout, tn), lambda bi, ni: (bi, 0, ni)),
        compiler_params=pltpu.CompilerParams(
            dimension_semantics=("parallel", "parallel"),
        ),
    )(w_flat, b_col, x_col)

    # Contiguous reshape back to NCHW (no transpose, no extra HBM pass).
    return out.reshape(b, cout, h, w)


class OverlapPatchEmbedPallas:
    """Pallas port of OverlapPatchEmbed: proj = Conv2d(in_c, embed_dim, 3, 1, 1)."""

    def __init__(self, in_c=3, embed_dim=48, bias=False, *, key=None):
        if key is None:
            key = jax.random.PRNGKey(0)
        kw, kb = jax.random.split(key)
        fan_in = in_c * 9
        bound = 1.0 / (fan_in ** 0.5)  # roughly matches PyTorch Conv2d init scale
        self.weight = jax.random.uniform(
            kw, (embed_dim, in_c, 3, 3), dtype=jnp.float32,
            minval=-bound, maxval=bound)
        if bias:
            self.bias = jax.random.uniform(
                kb, (embed_dim,), dtype=jnp.float32, minval=-bound, maxval=bound)
        else:
            self.bias = None

    def __call__(self, x):
        return _conv3x3_pallas(x, self.weight, self.bias)


def _reference(x, weight, bias):
    out = jax.lax.conv_general_dilated(
        x, weight,
        window_strides=(1, 1),
        padding=((1, 1), (1, 1)),
        dimension_numbers=("NCHW", "OIHW", "NCHW"),
        precision=jax.lax.Precision.HIGHEST,
    )
    if bias is not None:
        out = out + bias.reshape(1, -1, 1, 1)
    return out


if __name__ == "__main__":
    key = jax.random.PRNGKey(0)
    kx, kmod = jax.random.split(key)

    B, C_IN, H, W, EMBED = 2, 3, 16, 16, 48
    x = jax.random.normal(kx, (B, C_IN, H, W), dtype=jnp.float32)

    ok = True
    for use_bias in (False, True):
        mod = OverlapPatchEmbedPallas(C_IN, EMBED, bias=use_bias, key=kmod)
        out = jax.block_until_ready(mod(x))
        ref = _reference(x, mod.weight, mod.bias)
        if out.shape != ref.shape or not jnp.allclose(out, ref, atol=1e-4, rtol=1e-4):
            ok = False

    if ok:
        print("KERNEL_OK")
</pallas_src>

<mosaic_0001>
module attributes {stable_mosaic.version = 11 : i64} {
  func.func @_conv3x3_mm_kernel(%arg0: i32, %arg1: i32, %arg2: memref<48x27xf32, #tpu.memory_space<vmem>>, %arg3: memref<48x1xf32, #tpu.memory_space<vmem>>, %arg4: memref<1x27x256xf32, #tpu.memory_space<vmem>>, %arg5: memref<1x48x256xf32, #tpu.memory_space<vmem>>) attributes {dimension_semantics = [#tpu.dimension_semantics<parallel>, #tpu.dimension_semantics<parallel>], iteration_bounds = array<i64: 2, 1>, scalar_prefetch = 0 : i64, scratch_operands = 0 : i64, tpu.core_type = #tpu.core_type<tc>, window_params = [{pipeline_mode = #tpu.pipeline_mode<synchronous>, transform_indices = @transform_0, window_bounds = array<i64: 48, 27>}, {pipeline_mode = #tpu.pipeline_mode<synchronous>, transform_indices = @transform_1, window_bounds = array<i64: 48, 1>}, {transform_indices = @transform_2, window_bounds = array<i64: 1, 27, 256>}, {transform_indices = @transform_3, window_bounds = array<i64: 1, 48, 256>}]} {
    %c0 = arith.constant 0 : index
    %c0_0 = arith.constant 0 : index
    %0 = vector.load %arg2[%c0, %c0_0] : memref<48x27xf32, #tpu.memory_space<vmem>>, vector<48x27xf32>
    %c0_1 = arith.constant 0 : index
    %c0_2 = arith.constant 0 : index
    %c0_3 = arith.constant 0 : index
    %1 = vector.load %arg4[%c0_1, %c0_2, %c0_3] : memref<1x27x256xf32, #tpu.memory_space<vmem>>, vector<1x27x256xf32>
    %2 = vector.shape_cast %1 : vector<1x27x256xf32> to vector<27x256xf32>
    %cst = arith.constant dense<0.000000e+00> : vector<48x256xf32>
    %3 = tpu.matmul %0, %2, %cst {dimension_numbers = #tpu.dot_dimension_numbers<[1], [0], [0], [1], [0, 0, 1, 1], [], []>, precision = #tpu.contract_precision<fp32>} : vector<48x27xf32>, vector<27x256xf32>, vector<48x256xf32> -> vector<48x256xf32>
    %c0_4 = arith.constant 0 : index
    %c0_5 = arith.constant 0 : index
    %4 = vector.load %arg3[%c0_4, %c0_5] : memref<48x1xf32, #tpu.memory_space<vmem>>, vector<48x1xf32>
    %5 = vector.broadcast %4 : vector<48x1xf32> to vector<48x256xf32>
    %6 = arith.addf %3, %5 : vector<48x256xf32>
    %c0_6 = arith.constant 0 : index
    %c0_7 = arith.constant 0 : index
    %c0_8 = arith.constant 0 : index
    %7 = vector.load %arg5[%c0_6, %c0_7, %c0_8] : memref<1x48x256xf32, #tpu.memory_space<vmem>>, vector<1x48x256xf32>
    %8 = vector.shape_cast %7 : vector<1x48x256xf32> to vector<48x256xf32>
    %9 = vector.shape_cast %6 : vector<48x256xf32> to vector<1x48x256xf32>
    tpu.vector_store %arg5[%c0_6, %c0_7, %c0_8], %9 {strides = array<i32>} : memref<1x48x256xf32, #tpu.memory_space<vmem>>, vector<1x48x256xf32>,
    return
  }
  func.func @transform_0(%arg0: i32, %arg1: i32) -> (i32, i32) {
    %c0_i32 = arith.constant 0 : i32
    %c0_i32_0 = arith.constant 0 : i32
    %c0_i32_1 = arith.constant 0 : i32
    return %c0_i32, %c0_i32_0 : i32, i32
  }
  func.func @transform_1(%arg0: i32, %arg1: i32) -> (i32, i32) {
    %c0_i32 = arith.constant 0 : i32
    %c0_i32_0 = arith.constant 0 : i32
    %c0_i32_1 = arith.constant 0 : i32
    return %c0_i32, %c0_i32_0 : i32, i32
  }
  func.func @transform_2(%arg0: i32, %arg1: i32) -> (i32, i32, i32) {
    %c0_i32 = arith.constant 0 : i32
    %c0_i32_0 = arith.constant 0 : i32
    return %arg0, %c0_i32, %arg1 : i32, i32, i32
  }
  func.func @transform_3(%arg0: i32, %arg1: i32) -> (i32, i32, i32) {
    %c0_i32 = arith.constant 0 : i32
    %c0_i32_0 = arith.constant 0 : i32
    return %arg0, %c0_i32, %arg1 : i32, i32, i32
  }
}

</mosaic_0001>

<llo_original>
// kernel: tpu_custom_call.1
$region0: #{tpu_custom_call.1}
  #allocation0 [shape = 'u32[]', space=smem, size = 0x4, offset = 0x4, fixed_abs, tag = 'smem constant byte address 0x4 - core index']
  #allocation1 [shape = 'u32[144,128]{1,0:T(1,128)}', space=vmem, size = 0x12000, scoped, tag = 'internal scratch']
  %s0 = inlined_call_operand.vmem [shape: f32[48,27], index: 0, kind: input, shape index: {}]
  %s1 = inlined_call_operand.vmem [shape: f32[48,1], index: 1, kind: input, shape index: {}]
  %s2 = inlined_call_operand.vmem [shape: f32[2,27,256], index: 2, kind: input, shape index: {}]
  %s3 = inlined_call_operand.hbm [shape: f32[2,48,256], index: 3, kind: output, shape index: {}]
  %s4 = sld [smem:[#allocation0]]
  $region45: #{tpu_custom_call.1} parent=0
    _
  %s6 = ssub.s32 1, %s4
  %s7 = scalar_select 0, %s6, %s4
  $region1: #{tpu_custom_call.1} parent=0
    #allocation2 [shape = 'u8[98304]{0}', space=vmem, size = 0x18000, scoped, tag = 'output window, operand 0']
    #allocation3 [shape = 's32[2]{0}', space=sflag, size = 0x8, scoped, tag = 'scoped memory for tpu_custom_call.1']
    %8 = vsyncpa [#allocation3], 0
    %s9 = scalar_lea.sflag [#allocation3], 1
    %10 = vsyncpa %s9, 0
    loop: start=0, step=1, limit=4
    $region2: #{tpu_custom_call.1} parent=1 // loop_pre_header
      _
    $region3: #{tpu_custom_call.1} parent=1 // loop_header
      %s12 = sphi 0, %s16
      %p13 = scmp.ge.s32.totalorder %s12, 4
      %s19 = sphi 0, %s31
      %s20 = sphi 0, %s27
      %s21 = sphi 0, %s19
      %s22 = sphi 0, %s20
      %s23 = sphi 0, %s21
      %s24 = sphi 0, %s22
      %s32 = sphi 0, %s32
      %s34 = sphi 0, %s32
      %s35 = sphi 0, %s34
      %s49 = sphi 0, %s35
      %s53 = sphi 0, %s53
      %s55 = sphi 0, %s53
      %s56 = sphi 0, %s55
      %s70 = sphi 0, %s56
      %s78 = sphi 0, %s80
      %s81 = sphi 0, %s78
      %s82 = sphi 0, %s81
      %s98 = sphi 0, %s82
      %s106 = sphi 0, %s108
      %s109 = sphi 0, %s106
      %s110 = sphi 0, %s109
      %s126 = sphi 0, %s110
    $region4: #{tpu_custom_call.1} parent=1 // loop_header_branch
      %15 = sbr.rel (%p13) target = $region8
    $region5: #{tpu_custom_call.1} parent=1 // loop_body
      %s17 = ssub.s32 %s12, 1
      %s18 = ssub.s32 %s12, 2
      %s25 = sadd.s32 1, %s20
      %p26 = scmp.ge.s32.totalorder %s25, 1
      %s27 = scalar_select %p26, 0, %s25
      %s28 = sadd.s32 1, %s19
      %s29 = scalar_select %p26, %s28, %s19
      %p30 = scmp.ge.s32.totalorder %s29, 2
      %s31 = scalar_select %p30, 0, %s29
      %s33 = sadd.s32 %s32, 1
      %p36 = scmp.eq.s32.totalorder %s12, 1
      %p37 = scmp.ne.s32.totalorder %s32, %s34
      %p38 = scmp.eq.s32.totalorder %s12, 0
      %p39 = por %p37, %p38
      %p40 = scmp.ne.s32.totalorder %s32, %s34
      %p41 = scmp.eq.s32.totalorder %s17, 1
      %p42 = por %p40, %p41
      %p43 = scmp.ne.s32.totalorder %s34, %s35
      %p44 = scmp.eq.s32.totalorder %s17, 0
      %p45 = por %p43, %p44
      %p46 = scmp.ne.s32.totalorder %s34, %s35
      %p47 = scmp.eq.s32.totalorder %s18, 1
      %p48 = por %p46, %p47
      %p50 = scmp.ne.s32.totalorder %s35, %s49
      %p51 = scmp.eq.s32.totalorder %s18, 0
      %p52 = por %p50, %p51
      %s54 = sadd.s32 %s53, 1
      %p57 = scmp.eq.s32.totalorder %s12, 1
      %p58 = scmp.ne.s32.totalorder %s53, %s55
      %p59 = scmp.eq.s32.totalorder %s12, 0
      %p60 = por %p58, %p59
      %p61 = scmp.ne.s32.totalorder %s53, %s55
      %p62 = scmp.eq.s32.totalorder %s17, 1
      %p63 = por %p61, %p62
      %p64 = scmp.ne.s32.totalorder %s55, %s56
      %p65 = scmp.eq.s32.totalorder %s17, 0
      %p66 = por %p64, %p65
      %p67 = scmp.ne.s32.totalorder %s55, %s56
      %p68 = scmp.eq.s32.totalorder %s18, 1
      %p69 = por %p67, %p68
      %p71 = scmp.ne.s32.totalorder %s56, %s70
      %p72 = scmp.eq.s32.totalorder %s18, 0
      %p73 = por %p71, %p72
      %s74 = ssub.s32 %s19, %s31
      %s75 = ssub.s32 %s20, %s27
      %s76 = sor.u32 %s74, %s75
      %p77 = scmp.eq.s32.totalorder %s76, 0
      %s79 = sadd.s32 %s78, 1
      %s80 = scalar_select %p77, %s78, %s79
      %p83 = pneg %p77
      %p84 = scmp.eq.s32.totalorder %s12, 1
      %p85 = por %p83, %p84
      %p86 = scmp.ne.s32.totalorder %s78, %s81
      %p87 = scmp.eq.s32.totalorder %s12, 0
      %p88 = por %p86, %p87
      %p89 = scmp.ne.s32.totalorder %s78, %s81
      %p90 = scmp.eq.s32.totalorder %s17, 1
      %p91 = por %p89, %p90
      %p92 = scmp.ne.s32.totalorder %s81, %s82
      %p93 = scmp.eq.s32.totalorder %s17, 0
      %p94 = por %p92, %p93
      %p95 = scmp.ne.s32.totalorder %s81, %s82
      %p96 = scmp.eq.s32.totalorder %s18, 1
      %p97 = por %p95, %p96
      %p99 = scmp.ne.s32.totalorder %s82, %s98
      %p100 = scmp.eq.s32.totalorder %s18, 0
      %p101 = por %p99, %p100
      %s102 = ssub.s32 %s19, %s31
      %s103 = ssub.s32 %s20, %s27
      %s104 = sor.u32 %s102, %s103
      %p105 = scmp.eq.s32.totalorder %s104, 0
      %s107 = sadd.s32 %s106, 1
      %s108 = scalar_select %p105, %s106, %s107
      %p111 = pneg %p105
      %p112 = scmp.eq.s32.totalorder %s12, 1
      %p113 = por %p111, %p112
      %p114 = scmp.ne.s32.totalorder %s106, %s109
      %p115 = scmp.eq.s32.totalorder %s12, 0
      %p116 = por %p114, %p115
      %p117 = scmp.ne.s32.totalorder %s106, %s109
      %p118 = scmp.eq.s32.totalorder %s17, 1
      %p119 = por %p117, %p118
      %p120 = scmp.ne.s32.totalorder %s109, %s110
      %p121 = scmp.eq.s32.totalorder %s17, 0
      %p122 = por %p120, %p121
      %p123 = scmp.ne.s32.totalorder %s109, %s110
      %p124 = scmp.eq.s32.totalorder %s18, 1
      %p125 = por %p123, %p124
      %p127 = scmp.ne.s32.totalorder %s110, %s126
      %p128 = scmp.eq.s32.totalorder %s18, 0
      %p129 = por %p127, %p128
      %p130 = scmp.le.s32.totalorder 1, %s12
      %p131 = scmp.lt.s32.totalorder %s12, 3
      %p132 = pnand %p130, %p131
      %p133 = pneg %p132
      // Predicated region
      $region9: #{tpu_custom_call.1} parent=5 // pred_check
        _
      $region10: #{tpu_custom_call.1} parent=5 // pred_check_branch
        %135 = sbr.rel (%p132) target = $region12
      $region11: #{tpu_custom_call.1} parent=5 // pred_region
        %s136 = ssub.s32 %s12, 1
        // Predicated region
        $region13: #{tpu_custom_call.1} parent=11 // pred_check
          %p137 = pneg %p45
        $region14: #{tpu_custom_call.1} parent=11 // pred_check_branch
          %139 = sbr.rel (%p137) target = $region16
        $region15: #{tpu_custom_call.1} parent=11 // pred_region
          _
        $region16: #{tpu_custom_call.1} parent=11 // pred_fallthru
          _
        // Predicated region
        $region17: #{tpu_custom_call.1} parent=11 // pred_check
          %p140 = pneg %p66
        $region18: #{tpu_custom_call.1} parent=11 // pred_check_branch
          %142 = sbr.rel (%p140) target = $region20
        $region19: #{tpu_custom_call.1} parent=11 // pred_region
          _
        $region20: #{tpu_custom_call.1} parent=11 // pred_fallthru
          _
      $region12: #{tpu_custom_call.1} parent=5 // pred_fallthru
        _
      %p143 = scmp.lt.s32.totalorder %s12, 2
      // Predicated region
      $region21: #{tpu_custom_call.1} parent=5 // pred_check
        %p144 = pneg %p143
      $region22: #{tpu_custom_call.1} parent=5 // pred_check_branch
        %146 = sbr.rel (%p144) target = $region24
      $region23: #{tpu_custom_call.1} parent=5 // pred_region
        // Predicated region
        $region25: #{tpu_custom_call.1} parent=23 // pred_check
          %p147 = pneg %p88
        $region26: #{tpu_custom_call.1} parent=23 // pred_check_branch
          %149 = sbr.rel (%p147) target = $region28
        $region27: #{tpu_custom_call.1} parent=23 // pred_region
          %s150 = smul.u32 2, %s20
          %p151 = scmp.lt.s32.totalorder %s19, 1
          %s152 = scalar_select %p151, %s19, 1
          %p153 = scmp.lt.s32.totalorder %s150, 1
          %s154 = scalar_select %p153, %s150, 1
          %s155 = smul.addr %s152, 8
          %s156 = sadd.s32 %s154, %s155
          %s157 = smul.addr %s156, 8
          %s158 = scalar_lea.vmem %s2, %s157
          %s159 = smul.u32 2, %s20
        $region28: #{tpu_custom_call.1} parent=23 // pred_fallthru
          _
      $region24: #{tpu_custom_call.1} parent=5 // pred_fallthru
        _
      %p160 = scmp.le.s32.totalorder 1, %s12
      %p161 = scmp.lt.s32.totalorder %s12, 3
      %p162 = pnand %p160, %p161
      %p163 = pneg %p162
      // Predicated region
      $region29: #{tpu_custom_call.1} parent=5 // pred_check
        _
      $region30: #{tpu_custom_call.1} parent=5 // pred_check_branch
        %165 = sbr.rel (%p162) target = $region32
      $region31: #{tpu_custom_call.1} parent=5 // pred_region
        %s166 = ssub.s32 %s12, 1
        %p167 = pneg %p45
        %p168 = pneg %p42
        %p169 = pneg %p66
        %p170 = pneg %p63
        %s171 = smul.u32 2, %s22
        %p172 = scmp.lt.s32.totalorder %s21, 1
        %s173 = scalar_select %p172, %s21, 1
        %p174 = scmp.lt.s32.totalorder %s171, 1
        %s175 = scalar_select %p174, %s171, 1
        %s176 = smul.addr %s173, 8
        %s177 = sadd.s32 %s175, %s176
        %s178 = smul.addr %s177, 8
        %s179 = scalar_lea.vmem %s2, %s178
        %p180 = pneg %p94
        %p181 = pneg %p91
        %p182 = pneg %p122
        %p183 = pneg %p119
        %s184 = sand.u32 %s109, 1
        %s185 = scalar_lea.sflag [#allocation3], %s184
        %s186 = sand.u32 %s109, 1
        %s187 = smul.addr %s186, 96
        %s188 = scalar_lea.vmem [#allocation2], %s187
        %s189 = smul.u32 2, %s22
        %p190 = scmp.lt.s32.totalorder %s21, 1
        %s191 = scalar_select %p190, %s21, 1
        %p192 = scmp.lt.s32.totalorder %s189, 1
        %s193 = scalar_select %p192, %s189, 1
        %s194 = smul.addr %s191, 8
        %s195 = sadd.s32 %s193, %s194
        %s196 = smul.addr %s195, 8
        %s197 = scalar_lea.vmem %s2, %s196
        %s198 = smul.u32 2, %s22
        %s199 = smul.u32 2, %s22
        %v200 = vld [vmem:[%s0] sm:$0xff]
        %v201 = vld [vmem:[%s0 + $0x8] sm:$0xff]
        %v202 = vld [vmem:[%s0 + $0x10] sm:$0xff]
        %v203 = vld [vmem:[%s0 + $0x18] sm:$0xff]
        %v204 = vld [vmem:[%s0 + $0x20] sm:$0xff]
        %v205 = vld [vmem:[%s0 + $0x28] sm:$0xff]
        %v206 = vld [vmem:[%s197] sm:$0xff]
        %v207 = vld [vmem:[%s197 + $0x8] sm:$0xff]
        %v208 = vld [vmem:[%s197 + $0x10] sm:$0xff]
        %v209 = vld [vmem:[%s197 + $0x18] sm:$0xff]
        %v210 = vld [vmem:[%s197 + $0x20] sm:$0xff]
        %v211 = vld [vmem:[%s197 + $0x28] sm:$0xff]
        %v212 = vld [vmem:[%s197 + $0x30] sm:$0x7]
        %v213 = vld [vmem:[%s197 + $0x38] sm:$0x7]
        %v214 = vld [vmem:[%s1] sm:$0xff]
        %v215 = vld [vmem:[%s1 + $0x8] sm:$0xff]
        %v216 = vld [vmem:[%s1 + $0x10] sm:$0xff]
        %v217 = vld [vmem:[%s1 + $0x18] sm:$0xff]
        %v218 = vld [vmem:[%s1 + $0x20] sm:$0xff]
        %v219 = vld [vmem:[%s1 + $0x28] sm:$0xff]
        %221 = vset.pattern.permute.xlu0 0
        %222 = vperm.xlu0 %221, %v214
        %v223 = vpop.permute.xlu0 %222
        %226 = vset.pattern.permute.xlu0 0
        %227 = vperm.xlu0 %226, %v215
        %v228 = vpop.permute.xlu0 %227
        %231 = vset.pattern.permute.xlu0 0
        %232 = vperm.xlu0 %231, %v216
        %v233 = vpop.permute.xlu0 %232
        %236 = vset.pattern.permute.xlu0 0
        %237 = vperm.xlu0 %236, %v217
        %v238 = vpop.permute.xlu0 %237
        %241 = vset.pattern.permute.xlu0 0
        %242 = vperm.xlu0 %241, %v218
        %v243 = vpop.permute.xlu0 %242
        %246 = vset.pattern.permute.xlu0 0
        %247 = vperm.xlu0 %246, %v219
        %v248 = vpop.permute.xlu0 %247
        %vm250 = vcmask 220160
        %v252 = vsel %vm250, %v200, 0
        %v255 = vsel %vm250, %v201, 0
        %v258 = vsel %vm250, %v202, 0
        %v261 = vsel %vm250, %v203, 0
        %v264 = vsel %vm250, %v204, 0
        %v267 = vsel %vm250, %v205, 0
        %vm269 = vcmask 1042432
        %v271 = vsel %vm269, %v212, 0
        %v274 = vsel %vm269, %v213, 0
        %276 = vmatprep.subr.mxu0 0.0
        %277 = vmatpush1.msra.mxu0 0.0
        %278 = vmatprep.subr.mxu0 0.0
        %279 = vmatpush1.msra.mxu0 0.0
        %280 = vmatprep.subr.mxu0 0.0
        %281 = vmatpush1.msra.mxu0 0.0
        %282 = vmatprep.subr.mxu0 0.0
        %283 = vmatpush1.msra.mxu0 0.0
        %284 = vmatprep.subr.mxu0 0.0
        %285 = vmatpush1.msra.mxu0 0.0
        %286 = vmatprep.subr.mxu0 0.0
        %287 = vmatpush1.msra.mxu0 0.0
        %288 = vmatprep.subr.mxu0 0.0
        %289 = vmatpush1.msra.mxu0 0.0
        %290 = vmatprep.subr.mxu0 0.0
        %291 = vmatpush1.msra.mxu0 0.0
        %292 = vmatprep.subr.mxu0 0.0
        %293 = vmatpush1.msra.mxu0 0.0
        %294 = vmatprep.subr.mxu0 0.0
        %295 = vmatpush1.msra.mxu0 0.0
        %296 = vmatprep.subr.mxu0 0.0
        %297 = vmatpush1.msra.mxu0 0.0
        %298 = vmatprep.subr.mxu0 0.0
        %299 = vmatpush1.msra.mxu0 0.0
        %v300 = vand.u32 %v274, 4294901760
        %301 = vmatprep.subr.mxu0 %v300
        %v302 = vand.u32 %v271, 4294901760
        %303 = vmatpush1.msra.mxu0 %v302
        %v304 = vand.u32 %v211, 4294901760
        %305 = vmatprep.subr.mxu0 %v304
        %v306 = vand.u32 %v210, 4294901760
        %307 = vmatpush1.msra.mxu0 %v306
        %v308 = vand.u32 %v209, 4294901760
        %309 = vmatprep.subr.mxu0 %v308
        %v310 = vand.u32 %v208, 4294901760
        %311 = vmatpush1.msra.mxu0 %v310
        %v312 = vand.u32 %v207, 4294901760
        %313 = vmatprep.subr.mxu0 %v312
        %v314 = vand.u32 %v206, 4294901760
        %315 = vmatpush1.msra.mxu0 %v314
        %316 = vmatprep.subr.mxu0 0.0
        %317 = vmatpush2.msra.mxu0 0.0
        %318 = vmatprep.subr.mxu0 0.0
        %319 = vmatpush2.msra.mxu0 0.0
        %320 = vmatprep.subr.mxu0 0.0
        %321 = vmatpush2.msra.mxu0 0.0
        %322 = vmatprep.subr.mxu0 0.0
        %323 = vmatpush2.msra.mxu0 0.0
        %324 = vmatprep.subr.mxu0 0.0
        %325 = vmatpush2.msra.mxu0 0.0
        %326 = vmatprep.subr.mxu0 0.0
        %327 = vmatpush2.msra.mxu0 0.0
        %328 = vmatprep.subr.mxu0 0.0
        %329 = vmatpush2.msra.mxu0 0.0
        %330 = vmatprep.subr.mxu0 0.0
        %331 = vmatpush2.msra.mxu0 0.0
        %332 = vmatprep.subr.mxu0 0.0
        %333 = vmatpush2.msra.mxu0 0.0
        %334 = vmatprep.subr.mxu0 0.0
        %335 = vmatpush2.msra.mxu0 0.0
        %336 = vmatprep.subr.mxu0 0.0
        %337 = vmatpush2.msra.mxu0 0.0
        %338 = vmatprep.subr.mxu0 0.0
        %339 = vmatpush2.msra.mxu0 0.0
        %340 = vmatprep.subr.mxu0 0.0
        %341 = vmatpush2.msra.mxu0 0.0
        %342 = vmatprep.subr.mxu0 0.0
        %343 = vmatpush2.msra.mxu0 0.0
        %344 = vmatprep.subr.mxu0 0.0
        %345 = vmatpush2.msra.mxu0 0.0
        %346 = vmatprep.subr.mxu0 0.0
        %347 = vmatpush2.msra.mxu0 0.0
        %348 = vmatprep.mubr.f32.mxu0 0.0
        %v349 = vand.u32 %v252, 4294901760
        %v350 = vsub.f32 %v252, %v349
        %v351 = vand.u32 %v350, 4294901760
        %v352 = vsub.f32 %v350, %v351
        %v353 = vand.u32 %v352, 4294901760
        %354 = vmatmul.mubr.f32.gmra.mxu0 %v353
        %v355 = vpop.f32.mrf.mxu0
        %v356 = vadd.f32 %v223, %v355
        %v357 = vpop.f32.mrf.mxu0
        %v358 = vadd.f32 %v223, %v357
        %359 = vmatprep.mubr.f32.mxu0 0.0
        %v360 = vand.u32 %v255, 4294901760
        %v361 = vsub.f32 %v255, %v360
        %v362 = vand.u32 %v361, 4294901760
        %v363 = vsub.f32 %v361, %v362
        %v364 = vand.u32 %v363, 4294901760
        %365 = vmatmul.mubr.f32.gmra.mxu0 %v364
        %v366 = vpop.f32.mrf.mxu0
        %v367 = vadd.f32 %v228, %v366
        %v368 = vpop.f32.mrf.mxu0
        %v369 = vadd.f32 %v228, %v368
        %370 = vmatprep.mubr.f32.mxu0 0.0
        %v371 = vand.u32 %v258, 4294901760
        %v372 = vsub.f32 %v258, %v371
        %v373 = vand.u32 %v372, 4294901760
        %v374 = vsub.f32 %v372, %v373
        %v375 = vand.u32 %v374, 4294901760
        %376 = vmatmul.mubr.f32.gmra.mxu0 %v375
        %v377 = vpop.f32.mrf.mxu0
        %v378 = vadd.f32 %v233, %v377
        %v379 = vpop.f32.mrf.mxu0
        %v380 = vadd.f32 %v233, %v379
        %381 = vmatprep.mubr.f32.mxu0 0.0
        %v382 = vand.u32 %v261, 4294901760
        %v383 = vsub.f32 %v261, %v382
        %v384 = vand.u32 %v383, 4294901760
        %v385 = vsub.f32 %v383, %v384
        %v386 = vand.u32 %v385, 4294901760
        %387 = vmatmul.mubr.f32.gmra.mxu0 %v386
        %v388 = vpop.f32.mrf.mxu0
        %v389 = vadd.f32 %v238, %v388
        %v390 = vpop.f32.mrf.mxu0
        %v391 = vadd.f32 %v238, %v390
        %392 = vmatprep.mubr.f32.mxu0 0.0
        %v393 = vand.u32 %v264, 4294901760
        %v394 = vsub.f32 %v264, %v393
        %v395 = vand.u32 %v394, 4294901760
        %v396 = vsub.f32 %v394, %v395
        %v397 = vand.u32 %v396, 4294901760
        %398 = vmatmul.mubr.f32.gmra.mxu0 %v397
        %v399 = vpop.f32.mrf.mxu0
        %v400 = vadd.f32 %v243, %v399
        %v401 = vpop.f32.mrf.mxu0
        %v402 = vadd.f32 %v243, %v401
        %403 = vmatprep.mubr.f32.mxu0 0.0
        %v404 = vand.u32 %v267, 4294901760
        %v405 = vsub.f32 %v267, %v404
        %v406 = vand.u32 %v405, 4294901760
        %v407 = vsub.f32 %v405, %v406
        %v408 = vand.u32 %v407, 4294901760
        %409 = vmatmul.mubr.f32.gmra.mxu0 %v408
        %v410 = vpop.f32.mrf.mxu0
        %v411 = vadd.f32 %v248, %v410
        %v412 = vpop.f32.mrf.mxu0
        %v413 = vadd.f32 %v248, %v412
        %414 = vdwg.mxu0
        %415 = vmatprep.subr.mxu0 0.0
        %416 = vmatpush1.msra.mxu0 0.0
        %417 = vmatprep.subr.mxu0 0.0
        %418 = vmatpush1.msra.mxu0 0.0
        %419 = vmatprep.subr.mxu0 0.0
        %420 = vmatpush1.msra.mxu0 0.0
        %421 = vmatprep.subr.mxu0 0.0
        %422 = vmatpush1.msra.mxu0 0.0
        %423 = vmatprep.subr.mxu0 0.0
        %424 = vmatpush1.msra.mxu0 0.0
        %425 = vmatprep.subr.mxu0 0.0
        %426 = vmatpush1.msra.mxu0 0.0
        %427 = vmatprep.subr.mxu0 0.0
        %428 = vmatpush1.msra.mxu0 0.0
        %429 = vmatprep.subr.mxu0 0.0
        %430 = vmatpush1.msra.mxu0 0.0
        %431 = vmatprep.subr.mxu0 0.0
        %432 = vmatpush1.msra.mxu0 0.0
        %433 = vmatprep.subr.mxu0 0.0
        %434 = vmatpush1.msra.mxu0 0.0
        %435 = vmatprep.subr.mxu0 0.0
        %436 = vmatpush1.msra.mxu0 0.0
        %437 = vmatprep.subr.mxu0 0.0
        %438 = vmatpush1.msra.mxu0 0.0
        %v439 = vand.u32 %v274, 4294901760
        %v440 = vsub.f32 %v274, %v439
        %v441 = vand.u32 %v440, 4294901760
        %v442 = vsub.f32 %v440, %v441
        %v443 = vand.u32 %v442, 4294901760
        %444 = vmatprep.subr.mxu0 %v443
        %v445 = vand.u32 %v271, 4294901760
        %v446 = vsub.f32 %v271, %v445
        %v447 = vand.u32 %v446, 4294901760
        %v448 = vsub.f32 %v446, %v447
        %v449 = vand.u32 %v448, 4294901760
        %450 = vmatpush1.msra.mxu0 %v449
        %v451 = vand.u32 %v211, 4294901760
        %v452 = vsub.f32 %v211, %v451
        %v453 = vand.u32 %v452, 4294901760
        %v454 = vsub.f32 %v452, %v453
        %v455 = vand.u32 %v454, 4294901760
        %456 = vmatprep.subr.mxu0 %v455
        %v457 = vand.u32 %v210, 4294901760
        %v458 = vsub.f32 %v210, %v457
        %v459 = vand.u32 %v458, 4294901760
        %v460 = vsub.f32 %v458, %v459
        %v461 = vand.u32 %v460, 4294901760
        %462 = vmatpush1.msra.mxu0 %v461
        %v463 = vand.u32 %v209, 4294901760
        %v464 = vsub.f32 %v209, %v463
        %v465 = vand.u32 %v464, 4294901760
        %v466 = vsub.f32 %v464, %v465
        %v467 = vand.u32 %v466, 4294901760
        %468 = vmatprep.subr.mxu0 %v467
        %v469 = vand.u32 %v208, 4294901760
        %v470 = vsub.f32 %v208, %v469
        %v471 = vand.u32 %v470, 4294901760
        %v472 = vsub.f32 %v470, %v471
        %v473 = vand.u32 %v472, 4294901760
        %474 = vmatpush1.msra.mxu0 %v473
        %v475 = vand.u32 %v207, 4294901760
        %v476 = vsub.f32 %v207, %v475
        %v477 = vand.u32 %v476, 4294901760
        %v478 = vsub.f32 %v476, %v477
        %v479 = vand.u32 %v478, 4294901760
        %480 = vmatprep.subr.mxu0 %v479
        %v481 = vand.u32 %v206, 4294901760
        %v482 = vsub.f32 %v206, %v481
        %v483 = vand.u32 %v482, 4294901760
        %v484 = vsub.f32 %v482, %v483
        %v485 = vand.u32 %v484, 4294901760
        %486 = vmatpush1.msra.mxu0 %v485
        %487 = vmatprep.subr.mxu0 0.0
        %488 = vmatpush2.msra.mxu0 0.0
        %489 = vmatprep.subr.mxu0 0.0
        %490 = vmatpush2.msra.mxu0 0.0
        %491 = vmatprep.subr.mxu0 0.0
        %492 = vmatpush2.msra.mxu0 0.0
        %493 = vmatprep.subr.mxu0 0.0
        %494 = vmatpush2.msra.mxu0 0.0
        %495 = vmatprep.subr.mxu0 0.0
        %496 = vmatpush2.msra.mxu0 0.0
        %497 = vmatprep.subr.mxu0 0.0
        %498 = vmatpush2.msra.mxu0 0.0
        %499 = vmatprep.subr.mxu0 0.0
        %500 = vmatpush2.msra.mxu0 0.0
        %501 = vmatprep.subr.mxu0 0.0
        %502 = vmatpush2.msra.mxu0 0.0
        %503 = vmatprep.subr.mxu0 0.0
        %504 = vmatpush2.msra.mxu0 0.0
        %505 = vmatprep.subr.mxu0 0.0
        %506 = vmatpush2.msra.mxu0 0.0
        %507 = vmatprep.subr.mxu0 0.0
        %508 = vmatpush2.msra.mxu0 0.0
        %509 = vmatprep.subr.mxu0 0.0
        %510 = vmatpush2.msra.mxu0 0.0
        %511 = vmatprep.subr.mxu0 0.0
        %512 = vmatpush2.msra.mxu0 0.0
        %513 = vmatprep.subr.mxu0 0.0
        %514 = vmatpush2.msra.mxu0 0.0
        %515 = vmatprep.subr.mxu0 0.0
        %516 = vmatpush2.msra.mxu0 0.0
        %517 = vmatprep.subr.mxu0 0.0
        %518 = vmatpush2.msra.mxu0 0.0
        %519 = vmatprep.mubr.f32.mxu0 0.0
        %v520 = vand.u32 %v252, 4294901760
        %521 = vmatmul.mubr.f32.gmra.mxu0 %v520
        %v522 = vpop.f32.mrf.mxu0
        %v523 = vadd.f32 %v356, %v522
        %v524 = vpop.f32.mrf.mxu0
        %v525 = vadd.f32 %v358, %v524
        %526 = vmatprep.mubr.f32.mxu0 0.0
        %v527 = vand.u32 %v255, 4294901760
        %528 = vmatmul.mubr.f32.gmra.mxu0 %v527
        %v529 = vpop.f32.mrf.mxu0
        %v530 = vadd.f32 %v367, %v529
        %v531 = vpop.f32.mrf.mxu0
        %v532 = vadd.f32 %v369, %v531
        %533 = vmatprep.mubr.f32.mxu0 0.0
        %v534 = vand.u32 %v258, 4294901760
        %535 = vmatmul.mubr.f32.gmra.mxu0 %v534
        %v536 = vpop.f32.mrf.mxu0
        %v537 = vadd.f32 %v378, %v536
        %v538 = vpop.f32.mrf.mxu0
        %v539 = vadd.f32 %v380, %v538
        %540 = vmatprep.mubr.f32.mxu0 0.0
        %v541 = vand.u32 %v261, 4294901760
        %542 = vmatmul.mubr.f32.gmra.mxu0 %v541
        %v543 = vpop.f32.mrf.mxu0
        %v544 = vadd.f32 %v389, %v543
        %v545 = vpop.f32.mrf.mxu0
        %v546 = vadd.f32 %v391, %v545
        %547 = vmatprep.mubr.f32.mxu0 0.0
        %v548 = vand.u32 %v264, 4294901760
        %549 = vmatmul.mubr.f32.gmra.mxu0 %v548
        %v550 = vpop.f32.mrf.mxu0
        %v551 = vadd.f32 %v400, %v550
        %v552 = vpop.f32.mrf.mxu0
        %v553 = vadd.f32 %v402, %v552
        %554 = vmatprep.mubr.f32.mxu0 0.0
        %v555 = vand.u32 %v267, 4294901760
        %556 = vmatmul.mubr.f32.gmra.mxu0 %v555
        %v557 = vpop.f32.mrf.mxu0
        %v558 = vadd.f32 %v411, %v557
        %v559 = vpop.f32.mrf.mxu0
        %v560 = vadd.f32 %v413, %v559
        %561 = vdwg.mxu0
        %562 = vmatprep.subr.mxu0 0.0
        %563 = vmatpush1.msra.mxu0 0.0
        %564 = vmatprep.subr.mxu0 0.0
        %565 = vmatpush1.msra.mxu0 0.0
        %566 = vmatprep.subr.mxu0 0.0
        %567 = vmatpush1.msra.mxu0 0.0
        %568 = vmatprep.subr.mxu0 0.0
        %569 = vmatpush1.msra.mxu0 0.0
        %570 = vmatprep.subr.mxu0 0.0
        %571 = vmatpush1.msra.mxu0 0.0
        %572 = vmatprep.subr.mxu0 0.0
        %573 = vmatpush1.msra.mxu0 0.0
        %574 = vmatprep.subr.mxu0 0.0
        %575 = vmatpush1.msra.mxu0 0.0
        %576 = vmatprep.subr.mxu0 0.0
        %577 = vmatpush1.msra.mxu0 0.0
        %578 = vmatprep.subr.mxu0 0.0
        %579 = vmatpush1.msra.mxu0 0.0
        %580 = vmatprep.subr.mxu0 0.0
        %581 = vmatpush1.msra.mxu0 0.0
        %582 = vmatprep.subr.mxu0 0.0
        %583 = vmatpush1.msra.mxu0 0.0
        %584 = vmatprep.subr.mxu0 0.0
        %585 = vmatpush1.msra.mxu0 0.0
        %v586 = vand.u32 %v274, 4294901760
        %v587 = vsub.f32 %v274, %v586
        %588 = vmatprep.subr.mxu0 %v587
        %v589 = vand.u32 %v271, 4294901760
        %v590 = vsub.f32 %v271, %v589
        %591 = vmatpush1.msra.mxu0 %v590
        %v592 = vand.u32 %v211, 4294901760
        %v593 = vsub.f32 %v211, %v592
        %594 = vmatprep.subr.mxu0 %v593
        %v595 = vand.u32 %v210, 4294901760
        %v596 = vsub.f32 %v210, %v595
        %597 = vmatpush1.msra.mxu0 %v596
        %v598 = vand.u32 %v209, 4294901760
        %v599 = vsub.f32 %v209, %v598
        %600 = vmatprep.subr.mxu0 %v599
        %v601 = vand.u32 %v208, 4294901760
        %v602 = vsub.f32 %v208, %v601
        %603 = vmatpush1.msra.mxu0 %v602
        %v604 = vand.u32 %v207, 4294901760
        %v605 = vsub.f32 %v207, %v604
        %606 = vmatprep.subr.mxu0 %v605
        %v607 = vand.u32 %v206, 4294901760
        %v608 = vsub.f32 %v206, %v607
        %609 = vmatpush1.msra.mxu0 %v608
        %610 = vmatprep.subr.mxu0 0.0
        %611 = vmatpush2.msra.mxu0 0.0
        %612 = vmatprep.subr.mxu0 0.0
        %613 = vmatpush2.msra.mxu0 0.0
        %614 = vmatprep.subr.mxu0 0.0
        %615 = vmatpush2.msra.mxu0 0.0
        %616 = vmatprep.subr.mxu0 0.0
        %617 = vmatpush2.msra.mxu0 0.0
        %618 = vmatprep.subr.mxu0 0.0
        %619 = vmatpush2.msra.mxu0 0.0
        %620 = vmatprep.subr.mxu0 0.0
        %621 = vmatpush2.msra.mxu0 0.0
        %622 = vmatprep.subr.mxu0 0.0
        %623 = vmatpush2.msra.mxu0 0.0
        %624 = vmatprep.subr.mxu0 0.0
        %625 = vmatpush2.msra.mxu0 0.0
        %626 = vmatprep.subr.mxu0 0.0
        %627 = vmatpush2.msra.mxu0 0.0
        %628 = vmatprep.subr.mxu0 0.0
        %629 = vmatpush2.msra.mxu0 0.0
        %630 = vmatprep.subr.mxu0 0.0
        %631 = vmatpush2.msra.mxu0 0.0
        %632 = vmatprep.subr.mxu0 0.0
        %633 = vmatpush2.msra.mxu0 0.0
        %634 = vmatprep.subr.mxu0 0.0
        %635 = vmatpush2.msra.mxu0 0.0
        %636 = vmatprep.subr.mxu0 0.0
        %637 = vmatpush2.msra.mxu0 0.0
        %638 = vmatprep.subr.mxu0 0.0
        %639 = vmatpush2.msra.mxu0 0.0
        %640 = vmatprep.subr.mxu0 0.0
        %641 = vmatpush2.msra.mxu0 0.0
        %642 = vmatprep.mubr.f32.mxu0 0.0
        %v643 = vand.u32 %v252, 4294901760
        %v644 = vsub.f32 %v252, %v643
        %645 = vmatmul.mubr.f32.gmra.mxu0 %v644
        %v646 = vpop.f32.mrf.mxu0
        %v647 = vadd.f32 %v523, %v646
        %v648 = vpop.f32.mrf.mxu0
        %v649 = vadd.f32 %v525, %v648
        %650 = vmatprep.mubr.f32.mxu0 0.0
        %v651 = vand.u32 %v255, 4294901760
        %v652 = vsub.f32 %v255, %v651
        %653 = vmatmul.mubr.f32.gmra.mxu0 %v652
        %v654 = vpop.f32.mrf.mxu0
        %v655 = vadd.f32 %v530, %v654
        %v656 = vpop.f32.mrf.mxu0
        %v657 = vadd.f32 %v532, %v656
        %658 = vmatprep.mubr.f32.mxu0 0.0
        %v659 = vand.u32 %v258, 4294901760
        %v660 = vsub.f32 %v258, %v659
        %661 = vmatmul.mubr.f32.gmra.mxu0 %v660
        %v662 = vpop.f32.mrf.mxu0
        %v663 = vadd.f32 %v537, %v662
        %v664 = vpop.f32.mrf.mxu0
        %v665 = vadd.f32 %v539, %v664
        %666 = vmatprep.mubr.f32.mxu0 0.0
        %v667 = vand.u32 %v261, 4294901760
        %v668 = vsub.f32 %v261, %v667
        %669 = vmatmul.mubr.f32.gmra.mxu0 %v668
        %v670 = vpop.f32.mrf.mxu0
        %v671 = vadd.f32 %v544, %v670
        %v672 = vpop.f32.mrf.mxu0
        %v673 = vadd.f32 %v546, %v672
        %674 = vmatprep.mubr.f32.mxu0 0.0
        %v675 = vand.u32 %v264, 4294901760
        %v676 = vsub.f32 %v264, %v675
        %677 = vmatmul.mubr.f32.gmra.mxu0 %v676
        %v678 = vpop.f32.mrf.mxu0
        %v679 = vadd.f32 %v551, %v678
        %v680 = vpop.f32.mrf.mxu0
        %v681 = vadd.f32 %v553, %v680
        %682 = vmatprep.mubr.f32.mxu0 0.0
        %v683 = vand.u32 %v267, 4294901760
        %v684 = vsub.f32 %v267, %v683
        %685 = vmatmul.mubr.f32.gmra.mxu0 %v684
        %v686 = vpop.f32.mrf.mxu0
        %v687 = vadd.f32 %v558, %v686
        %v688 = vpop.f32.mrf.mxu0
        %v689 = vadd.f32 %v560, %v688
        %690 = vdwg.mxu0
        %691 = vmatprep.subr.mxu0 0.0
        %692 = vmatpush1.msra.mxu0 0.0
        %693 = vmatprep.subr.mxu0 0.0
        %694 = vmatpush1.msra.mxu0 0.0
        %695 = vmatprep.subr.mxu0 0.0
        %696 = vmatpush1.msra.mxu0 0.0
        %697 = vmatprep.subr.mxu0 0.0
        %698 = vmatpush1.msra.mxu0 0.0
        %699 = vmatprep.subr.mxu0 0.0
        %700 = vmatpush1.msra.mxu0 0.0
        %701 = vmatprep.subr.mxu0 0.0
        %702 = vmatpush1.msra.mxu0 0.0
        %703 = vmatprep.subr.mxu0 0.0
        %704 = vmatpush1.msra.mxu0 0.0
        %705 = vmatprep.subr.mxu0 0.0
        %706 = vmatpush1.msra.mxu0 0.0
        %707 = vmatprep.subr.mxu0 0.0
        %708 = vmatpush1.msra.mxu0 0.0
        %709 = vmatprep.subr.mxu0 0.0
        %710 = vmatpush1.msra.mxu0 0.0
        %711 = vmatprep.subr.mxu0 0.0
        %712 = vmatpush1.msra.mxu0 0.0
        %713 = vmatprep.subr.mxu0 0.0
        %714 = vmatpush1.msra.mxu0 0.0
        %v715 = vand.u32 %v274, 4294901760
        %716 = vmatprep.subr.mxu0 %v715
        %v717 = vand.u32 %v271, 4294901760
        %718 = vmatpush1.msra.mxu0 %v717
        %v719 = vand.u32 %v211, 4294901760
        %720 = vmatprep.subr.mxu0 %v719
        %v721 = vand.u32 %v210, 4294901760
        %722 = vmatpush1.msra.mxu0 %v721
        %v723 = vand.u32 %v209, 4294901760
        %724 = vmatprep.subr.mxu0 %v723
        %v725 = vand.u32 %v208, 4294901760
        %726 = vmatpush1.msra.mxu0 %v725
        %v727 = vand.u32 %v207, 4294901760
        %728 = vmatprep.subr.mxu0 %v727
        %v729 = vand.u32 %v206, 4294901760
        %730 = vmatpush1.msra.mxu0 %v729
        %731 = vmatprep.subr.mxu0 0.0
        %732 = vmatpush2.msra.mxu0 0.0
        %733 = vmatprep.subr.mxu0 0.0
        %734 = vmatpush2.msra.mxu0 0.0
        %735 = vmatprep.subr.mxu0 0.0
        %736 = vmatpush2.msra.mxu0 0.0
        %737 = vmatprep.subr.mxu0 0.0
        %738 = vmatpush2.msra.mxu0 0.0
        %739 = vmatprep.subr.mxu0 0.0
        %740 = vmatpush2.msra.mxu0 0.0
        %741 = vmatprep.subr.mxu0 0.0
        %742 = vmatpush2.msra.mxu0 0.0
        %743 = vmatprep.subr.mxu0 0.0
        %744 = vmatpush2.msra.mxu0 0.0
        %745 = vmatprep.subr.mxu0 0.0
        %746 = vmatpush2.msra.mxu0 0.0
        %747 = vmatprep.subr.mxu0 0.0
        %748 = vmatpush2.msra.mxu0 0.0
        %749 = vmatprep.subr.mxu0 0.0
        %750 = vmatpush2.msra.mxu0 0.0
        %751 = vmatprep.subr.mxu0 0.0
        %752 = vmatpush2.msra.mxu0 0.0
        %753 = vmatprep.subr.mxu0 0.0
        %754 = vmatpush2.msra.mxu0 0.0
        %755 = vmatprep.subr.mxu0 0.0
        %756 = vmatpush2.msra.mxu0 0.0
        %757 = vmatprep.subr.mxu0 0.0
        %758 = vmatpush2.msra.mxu0 0.0
        %759 = vmatprep.subr.mxu0 0.0
        %760 = vmatpush2.msra.mxu0 0.0
        %761 = vmatprep.subr.mxu0 0.0
        %762 = vmatpush2.msra.mxu0 0.0
        %763 = vmatprep.mubr.f32.mxu0 0.0
        %v764 = vand.u32 %v252, 4294901760
        %v765 = vsub.f32 %v252, %v764
        %v766 = vand.u32 %v765, 4294901760
        %767 = vmatmul.mubr.f32.gmra.mxu0 %v766
        %v768 = vpop.f32.mrf.mxu0
        %v769 = vadd.f32 %v647, %v768
        %v770 = vpop.f32.mrf.mxu0
        %v771 = vadd.f32 %v649, %v770
        %772 = vmatprep.mubr.f32.mxu0 0.0
        %v773 = vand.u32 %v255, 4294901760
        %v774 = vsub.f32 %v255, %v773
        %v775 = vand.u32 %v774, 4294901760
        %776 = vmatmul.mubr.f32.gmra.mxu0 %v775
        %v777 = vpop.f32.mrf.mxu0
        %v778 = vadd.f32 %v655, %v777
        %v779 = vpop.f32.mrf.mxu0
        %v780 = vadd.f32 %v657, %v779
        %781 = vmatprep.mubr.f32.mxu0 0.0
        %v782 = vand.u32 %v258, 4294901760
        %v783 = vsub.f32 %v258, %v782
        %v784 = vand.u32 %v783, 4294901760
        %785 = vmatmul.mubr.f32.gmra.mxu0 %v784
        %v786 = vpop.f32.mrf.mxu0
        %v787 = vadd.f32 %v663, %v786
        %v788 = vpop.f32.mrf.mxu0
        %v789 = vadd.f32 %v665, %v788
        %790 = vmatprep.mubr.f32.mxu0 0.0
        %v791 = vand.u32 %v261, 4294901760
        %v792 = vsub.f32 %v261, %v791
        %v793 = vand.u32 %v792, 4294901760
        %794 = vmatmul.mubr.f32.gmra.mxu0 %v793
        %v795 = vpop.f32.mrf.mxu0
        %v796 = vadd.f32 %v671, %v795
        %v797 = vpop.f32.mrf.mxu0
        %v798 = vadd.f32 %v673, %v797
        %799 = vmatprep.mubr.f32.mxu0 0.0
        %v800 = vand.u32 %v264, 4294901760
        %v801 = vsub.f32 %v264, %v800
        %v802 = vand.u32 %v801, 4294901760
        %803 = vmatmul.mubr.f32.gmra.mxu0 %v802
        %v804 = vpop.f32.mrf.mxu0
        %v805 = vadd.f32 %v679, %v804
        %v806 = vpop.f32.mrf.mxu0
        %v807 = vadd.f32 %v681, %v806
        %808 = vmatprep.mubr.f32.mxu0 0.0
        %v809 = vand.u32 %v267, 4294901760
        %v810 = vsub.f32 %v267, %v809
        %v811 = vand.u32 %v810, 4294901760
        %812 = vmatmul.mubr.f32.gmra.mxu0 %v811
        %v813 = vpop.f32.mrf.mxu0
        %v814 = vadd.f32 %v687, %v813
        %v815 = vpop.f32.mrf.mxu0
        %v816 = vadd.f32 %v689, %v815
        %817 = vdwg.mxu0
        %818 = vmatprep.subr.mxu0 0.0
        %819 = vmatpush1.msra.mxu0 0.0
        %820 = vmatprep.subr.mxu0 0.0
        %821 = vmatpush1.msra.mxu0 0.0
        %822 = vmatprep.subr.mxu0 0.0
        %823 = vmatpush1.msra.mxu0 0.0
        %824 = vmatprep.subr.mxu0 0.0
        %825 = vmatpush1.msra.mxu0 0.0
        %826 = vmatprep.subr.mxu0 0.0
        %827 = vmatpush1.msra.mxu0 0.0
        %828 = vmatprep.subr.mxu0 0.0
        %829 = vmatpush1.msra.mxu0 0.0
        %830 = vmatprep.subr.mxu0 0.0
        %831 = vmatpush1.msra.mxu0 0.0
        %832 = vmatprep.subr.mxu0 0.0
        %833 = vmatpush1.msra.mxu0 0.0
        %834 = vmatprep.subr.mxu0 0.0
        %835 = vmatpush1.msra.mxu0 0.0
        %836 = vmatprep.subr.mxu0 0.0
        %837 = vmatpush1.msra.mxu0 0.0
        %838 = vmatprep.subr.mxu0 0.0
        %839 = vmatpush1.msra.mxu0 0.0
        %840 = vmatprep.subr.mxu0 0.0
        %841 = vmatpush1.msra.mxu0 0.0
        %v842 = vand.u32 %v274, 4294901760
        %v843 = vsub.f32 %v274, %v842
        %v844 = vand.u32 %v843, 4294901760
        %845 = vmatprep.subr.mxu0 %v844
        %v846 = vand.u32 %v271, 4294901760
        %v847 = vsub.f32 %v271, %v846
        %v848 = vand.u32 %v847, 4294901760
        %849 = vmatpush1.msra.mxu0 %v848
        %v850 = vand.u32 %v211, 4294901760
        %v851 = vsub.f32 %v211, %v850
        %v852 = vand.u32 %v851, 4294901760
        %853 = vmatprep.subr.mxu0 %v852
        %v854 = vand.u32 %v210, 4294901760
        %v855 = vsub.f32 %v210, %v854
        %v856 = vand.u32 %v855, 4294901760
        %857 = vmatpush1.msra.mxu0 %v856
        %v858 = vand.u32 %v209, 4294901760
        %v859 = vsub.f32 %v209, %v858
        %v860 = vand.u32 %v859, 4294901760
        %861 = vmatprep.subr.mxu0 %v860
        %v862 = vand.u32 %v208, 4294901760
        %v863 = vsub.f32 %v208, %v862
        %v864 = vand.u32 %v863, 4294901760
        %865 = vmatpush1.msra.mxu0 %v864
        %v866 = vand.u32 %v207, 4294901760
        %v867 = vsub.f32 %v207, %v866
        %v868 = vand.u32 %v867, 4294901760
        %869 = vmatprep.subr.mxu0 %v868
        %v870 = vand.u32 %v206, 4294901760
        %v871 = vsub.f32 %v206, %v870
        %v872 = vand.u32 %v871, 4294901760
        %873 = vmatpush1.msra.mxu0 %v872
        %874 = vmatprep.subr.mxu0 0.0
        %875 = vmatpush2.msra.mxu0 0.0
        %876 = vmatprep.subr.mxu0 0.0
        %877 = vmatpush2.msra.mxu0 0.0
        %878 = vmatprep.subr.mxu0 0.0
        %879 = vmatpush2.msra.mxu0 0.0
        %880 = vmatprep.subr.mxu0 0.0
        %881 = vmatpush2.msra.mxu0 0.0
        %882 = vmatprep.subr.mxu0 0.0
        %883 = vmatpush2.msra.mxu0 0.0
        %884 = vmatprep.subr.mxu0 0.0
        %885 = vmatpush2.msra.mxu0 0.0
        %886 = vmatprep.subr.mxu0 0.0
        %887 = vmatpush2.msra.mxu0 0.0
        %888 = vmatprep.subr.mxu0 0.0
        %889 = vmatpush2.msra.mxu0 0.0
        %890 = vmatprep.subr.mxu0 0.0
        %891 = vmatpush2.msra.mxu0 0.0
        %892 = vmatprep.subr.mxu0 0.0
        %893 = vmatpush2.msra.mxu0 0.0
        %894 = vmatprep.subr.mxu0 0.0
        %895 = vmatpush2.msra.mxu0 0.0
        %896 = vmatprep.subr.mxu0 0.0
        %897 = vmatpush2.msra.mxu0 0.0
        %898 = vmatprep.subr.mxu0 0.0
        %899 = vmatpush2.msra.mxu0 0.0
        %900 = vmatprep.subr.mxu0 0.0
        %901 = vmatpush2.msra.mxu0 0.0
        %902 = vmatprep.subr.mxu0 0.0
        %903 = vmatpush2.msra.mxu0 0.0
        %904 = vmatprep.subr.mxu0 0.0
        %905 = vmatpush2.msra.mxu0 0.0
        %906 = vmatprep.mubr.f32.mxu0 0.0
        %v907 = vand.u32 %v252, 4294901760
        %908 = vmatmul.mubr.f32.gmra.mxu0 %v907
        %v909 = vpop.f32.mrf.mxu0
        %v910 = vadd.f32 %v769, %v909
        %v911 = vpop.f32.mrf.mxu0
        %v912 = vadd.f32 %v771, %v911
        %913 = vmatprep.mubr.f32.mxu0 0.0
        %v914 = vand.u32 %v255, 4294901760
        %915 = vmatmul.mubr.f32.gmra.mxu0 %v914
        %v916 = vpop.f32.mrf.mxu0
        %v917 = vadd.f32 %v778, %v916
        %v918 = vpop.f32.mrf.mxu0
        %v919 = vadd.f32 %v780, %v918
        %920 = vmatprep.mubr.f32.mxu0 0.0
        %v921 = vand.u32 %v258, 4294901760
        %922 = vmatmul.mubr.f32.gmra.mxu0 %v921
        %v923 = vpop.f32.mrf.mxu0
        %v924 = vadd.f32 %v787, %v923
        %v925 = vpop.f32.mrf.mxu0
        %v926 = vadd.f32 %v789, %v925
        %927 = vmatprep.mubr.f32.mxu0 0.0
        %v928 = vand.u32 %v261, 4294901760
        %929 = vmatmul.mubr.f32.gmra.mxu0 %v928
        %v930 = vpop.f32.mrf.mxu0
        %v931 = vadd.f32 %v796, %v930
        %v932 = vpop.f32.mrf.mxu0
        %v933 = vadd.f32 %v798, %v932
        %934 = vmatprep.mubr.f32.mxu0 0.0
        %v935 = vand.u32 %v264, 4294901760
        %936 = vmatmul.mubr.f32.gmra.mxu0 %v935
        %v937 = vpop.f32.mrf.mxu0
        %v938 = vadd.f32 %v805, %v937
        %v939 = vpop.f32.mrf.mxu0
        %v940 = vadd.f32 %v807, %v939
        %941 = vmatprep.mubr.f32.mxu0 0.0
        %v942 = vand.u32 %v267, 4294901760
        %943 = vmatmul.mubr.f32.gmra.mxu0 %v942
        %v944 = vpop.f32.mrf.mxu0
        %v945 = vadd.f32 %v814, %v944
        %v946 = vpop.f32.mrf.mxu0
        %v947 = vadd.f32 %v816, %v946
        %948 = vdwg.mxu0
        %949 = vmatprep.subr.mxu0 0.0
        %950 = vmatpush1.msra.mxu0 0.0
        %951 = vmatprep.subr.mxu0 0.0
        %952 = vmatpush1.msra.mxu0 0.0
        %953 = vmatprep.subr.mxu0 0.0
        %954 = vmatpush1.msra.mxu0 0.0
        %955 = vmatprep.subr.mxu0 0.0
        %956 = vmatpush1.msra.mxu0 0.0
        %957 = vmatprep.subr.mxu0 0.0
        %958 = vmatpush1.msra.mxu0 0.0
        %959 = vmatprep.subr.mxu0 0.0
        %960 = vmatpush1.msra.mxu0 0.0
        %961 = vmatprep.subr.mxu0 0.0
        %962 = vmatpush1.msra.mxu0 0.0
        %963 = vmatprep.subr.mxu0 0.0
        %964 = vmatpush1.msra.mxu0 0.0
        %965 = vmatprep.subr.mxu0 0.0
        %966 = vmatpush1.msra.mxu0 0.0
        %967 = vmatprep.subr.mxu0 0.0
        %968 = vmatpush1.msra.mxu0 0.0
        %969 = vmatprep.subr.mxu0 0.0
        %970 = vmatpush1.msra.mxu0 0.0
        %971 = vmatprep.subr.mxu0 0.0
        %972 = vmatpush1.msra.mxu0 0.0
        %v973 = vand.u32 %v274, 4294901760
        %974 = vmatprep.subr.mxu0 %v973
        %v975 = vand.u32 %v271, 4294901760
        %976 = vmatpush1.msra.mxu0 %v975
        %v977 = vand.u32 %v211, 4294901760
        %978 = vmatprep.subr.mxu0 %v977
        %v979 = vand.u32 %v210, 4294901760
        %980 = vmatpush1.msra.mxu0 %v979
        %v981 = vand.u32 %v209, 4294901760
        %982 = vmatprep.subr.mxu0 %v981
        %v983 = vand.u32 %v208, 4294901760
        %984 = vmatpush1.msra.mxu0 %v983
        %v985 = vand.u32 %v207, 4294901760
        %986 = vmatprep.subr.mxu0 %v985
        %v987 = vand.u32 %v206, 4294901760
        %988 = vmatpush1.msra.mxu0 %v987
        %989 = vmatprep.subr.mxu0 0.0
        %990 = vmatpush2.msra.mxu0 0.0
        %991 = vmatprep.subr.mxu0 0.0
        %992 = vmatpush2.msra.mxu0 0.0
        %993 = vmatprep.subr.mxu0 0.0
        %994 = vmatpush2.msra.mxu0 0.0
        %995 = vmatprep.subr.mxu0 0.0
        %996 = vmatpush2.msra.mxu0 0.0
        %997 = vmatprep.subr.mxu0 0.0
        %998 = vmatpush2.msra.mxu0 0.0
        %999 = vmatprep.subr.mxu0 0.0
        %1000 = vmatpush2.msra.mxu0 0.0
        %1001 = vmatprep.subr.mxu0 0.0
        %1002 = vmatpush2.msra.mxu0 0.0
        %1003 = vmatprep.subr.mxu0 0.0
        %1004 = vmatpush2.msra.mxu0 0.0
        %1005 = vmatprep.subr.mxu0 0.0
        %1006 = vmatpush2.msra.mxu0 0.0
        %1007 = vmatprep.subr.mxu0 0.0
        %1008 = vmatpush2.msra.mxu0 0.0
        %1009 = vmatprep.subr.mxu0 0.0
        %1010 = vmatpush2.msra.mxu0 0.0
        %1011 = vmatprep.subr.mxu0 0.0
        %1012 = vmatpush2.msra.mxu0 0.0
        %1013 = vmatprep.subr.mxu0 0.0
        %1014 = vmatpush2.msra.mxu0 0.0
        %1015 = vmatprep.subr.mxu0 0.0
        %1016 = vmatpush2.msra.mxu0 0.0
        %1017 = vmatprep.subr.mxu0 0.0
        %1018 = vmatpush2.msra.mxu0 0.0
        %1019 = vmatprep.subr.mxu0 0.0
        %1020 = vmatpush2.msra.mxu0 0.0
        %1021 = vmatprep.mubr.f32.mxu0 0.0
        %v1022 = vand.u32 %v252, 4294901760
        %1023 = vmatmul.mubr.f32.gmra.mxu0 %v1022
        %v1024 = vpop.f32.mrf.mxu0
        %v1025 = vadd.f32 %v910, %v1024
        %v1026 = vpop.f32.mrf.mxu0
        %v1027 = vadd.f32 %v912, %v1026
        %1028 = vmatprep.mubr.f32.mxu0 0.0
        %v1029 = vand.u32 %v255, 4294901760
        %1030 = vmatmul.mubr.f32.gmra.mxu0 %v1029
        %v1031 = vpop.f32.mrf.mxu0
        %v1032 = vadd.f32 %v917, %v1031
        %v1033 = vpop.f32.mrf.mxu0
        %v1034 = vadd.f32 %v919, %v1033
        %1035 = vmatprep.mubr.f32.mxu0 0.0
        %v1036 = vand.u32 %v258, 4294901760
        %1037 = vmatmul.mubr.f32.gmra.mxu0 %v1036
        %v1038 = vpop.f32.mrf.mxu0
        %v1039 = vadd.f32 %v924, %v1038
        %v1040 = vpop.f32.mrf.mxu0
        %v1041 = vadd.f32 %v926, %v1040
        %1042 = vmatprep.mubr.f32.mxu0 0.0
        %v1043 = vand.u32 %v261, 4294901760
        %1044 = vmatmul.mubr.f32.gmra.mxu0 %v1043
        %v1045 = vpop.f32.mrf.mxu0
        %v1046 = vadd.f32 %v931, %v1045
        %v1047 = vpop.f32.mrf.mxu0
        %v1048 = vadd.f32 %v933, %v1047
        %1049 = vmatprep.mubr.f32.mxu0 0.0
        %v1050 = vand.u32 %v264, 4294901760
        %1051 = vmatmul.mubr.f32.gmra.mxu0 %v1050
        %v1052 = vpop.f32.mrf.mxu0
        %v1053 = vadd.f32 %v938, %v1052
        %v1054 = vpop.f32.mrf.mxu0
        %v1055 = vadd.f32 %v940, %v1054
        %1056 = vmatprep.mubr.f32.mxu0 0.0
        %v1057 = vand.u32 %v267, 4294901760
        %1058 = vmatmul.mubr.f32.gmra.mxu0 %v1057
        %v1059 = vpop.f32.mrf.mxu0
        %v1060 = vadd.f32 %v945, %v1059
        %v1061 = vpop.f32.mrf.mxu0
        %v1062 = vadd.f32 %v947, %v1061
        %1063 = vdwg.mxu0
        %1064 = vst [vmem:[%s188] sm:$0xff] %v1025
        %1065 = vst [vmem:[%s188 + $0x8] sm:$0xff] %v1027
        %1066 = vst [vmem:[%s188 + $0x10] sm:$0xff] %v1032
        %1067 = vst [vmem:[%s188 + $0x18] sm:$0xff] %v1034
        %1068 = vst [vmem:[%s188 + $0x20] sm:$0xff] %v1039
        %1069 = vst [vmem:[%s188 + $0x28] sm:$0xff] %v1041
        %1070 = vst [vmem:[%s188 + $0x30] sm:$0xff] %v1046
        %1071 = vst [vmem:[%s188 + $0x38] sm:$0xff] %v1048
        %1072 = vst [vmem:[%s188 + $0x40] sm:$0xff] %v1053
        %1073 = vst [vmem:[%s188 + $0x48] sm:$0xff] %v1055
        %1074 = vst [vmem:[%s188 + $0x50] sm:$0xff] %v1060
        %1075 = vst [vmem:[%s188 + $0x58] sm:$0xff] %v1062
        %s1076 = sand.u32 %s109, 1
        %s1077 = scalar_lea.sflag [#allocation3], %s1076
        %s1078 = sand.u32 %s109, 1
        %s1079 = smul.addr %s1078, 96
        %s1080 = scalar_lea.vmem [#allocation2], %s1079
        // Predicated region
        $region33: #{tpu_custom_call.1} parent=31 // pred_check
          %p1081 = pneg %p119
        $region34: #{tpu_custom_call.1} parent=31 // pred_check_branch
          %1083 = sbr.rel (%p1081) target = $region36
        $region35: #{tpu_custom_call.1} parent=31 // pred_region
          %s1084 = smul.u32 2, %s22
          %s1086 = ssub.s32 1536, 1536
          %1087 = vsyncadd %s1077, %s1086
          %s1088 = smul.addr %s21, 12
          %s1089 = sadd.s32 %s1084, %s1088
          %s1090 = smul.addr %s1089, 128
          %s1091 = scalar_lea.hbm %s3, %s1090
          %s1092 = sshll.u32 %s1080, 4
          %s1093 = int_to_ptr.vmem [resolvable:$true] %s1092
          %1098 = dma.vmem_to_hbm [thread:$0]  %s1093, 1536, %s1091, %s1077, 256, 256, 16
        $region36: #{tpu_custom_call.1} parent=31 // pred_fallthru
          _
      $region32: #{tpu_custom_call.1} parent=5 // pred_fallthru
        _
      %p1099 = scmp.le.s32.totalorder 2, %s12
      // Predicated region
      $region37: #{tpu_custom_call.1} parent=5 // pred_check
        %p1100 = pneg %p1099
      $region38: #{tpu_custom_call.1} parent=5 // pred_check_branch
        %1102 = sbr.rel (%p1100) target = $region40
      $region39: #{tpu_custom_call.1} parent=5 // pred_region
        %s1103 = ssub.s32 %s12, 2
        // Predicated region
        $region41: #{tpu_custom_call.1} parent=39 // pred_check
          %p1104 = pneg %p125
        $region42: #{tpu_custom_call.1} parent=39 // pred_check_branch
          %1106 = sbr.rel (%p1104) target = $region44
        $region43: #{tpu_custom_call.1} parent=39 // pred_region
          %s1107 = sand.u32 %s110, 1
          %s1108 = scalar_lea.sflag [#allocation3], %s1107
          %s1109 = sand.u32 %s110, 1
          %s1110 = smul.addr %s1109, 96
          %s1111 = scalar_lea.vmem [#allocation2], %s1110
          %1112 = dma.done %s1108, 1536
        $region44: #{tpu_custom_call.1} parent=39 // pred_fallthru
          _
      $region40: #{tpu_custom_call.1} parent=5 // pred_fallthru
        _
    $region6: #{tpu_custom_call.1} parent=1 // loop_footer
      %s16 = sadd.s32 1, %s12
    $region7: #{tpu_custom_call.1} parent=1 // loop_footer_branch
      %11 = sbr.rel target = $region3
    $region8: #{tpu_custom_call.1} parent=1 // loop_exit
      _
    %1113 = vsyncpa [#allocation3], 1
    %s1114 = scalar_lea.sflag [#allocation3], 1
    %1115 = vsyncpa %s1114, 1

</llo_original>
